<compile_context>
chip_gen: v7x
topology: tpu7x:2x2x1
jax: 0.10.0
libtpu: 0.0.40
codegen_flags: <defaults>
</compile_context>

<pallas_src>
import functools

import jax
import jax.numpy as jnp
from jax.experimental import pallas as pl
from jax.experimental.pallas import tpu as pltpu

HIDDEN = 64            # width of Linear(input_dim, 64) / LayerNorm(64)
LN_EPS = 1e-5
TILE_ALIGN = 16        # keeps batch tiles (8,*)-aligned and pair-splittable
MAX_TILE_B = 8192      # rows per grid step cap (review: 4096-8192 when budget allows)


def _round_up(n, m):
    return ((n + m - 1) // m) * m


def _vmem_budget():
    """Generation-aware VMEM sizing: ~3/4 of physical VMEM as the Mosaic scoped limit,
    ~9/16 as the budget the tile picker may spend (96/72 MiB on 128-MiB v5e/v6e,
    48/36 MiB on 64-MiB v7x)."""
    try:
        cap = int(pltpu.get_tpu_info().vmem_capacity_bytes)
    except Exception:
        cap = 64 << 20
    cap = max(cap, 32 << 20)
    return (cap * 3) // 4, (cap * 9) // 16


def _pick_tile_b(B, D, x_itemsize, w_itemsize, out_itemsize, budget):
    """Largest 16-aligned batch tile whose double-buffered input/output slabs plus f32
    intermediates fit in `budget`. Big slabs amortize the ~0.35us per-grid-step cost."""
    fixed = (2 * D * HIDDEN * w_itemsize            # W (double-buffered by the pipeline)
             + 8 * (D + HIDDEN) * 4                 # bias + LN gammas/betas
             + (1 << 16))                           # slack
    per_row = (2 * D * x_itemsize                   # x tile, double-buffered
               + 2 * D * 4                          # f32 feature-norm intermediates
               + 2 * HIDDEN * out_itemsize          # out tile, double-buffered
               + 6 * HIDDEN * 4)                    # h / centered-h / normalized-h temps
    tile = (budget - fixed) // per_row
    tile = max(tile, TILE_ALIGN)
    tile = min(tile, MAX_TILE_B, _round_up(B, TILE_ALIGN))
    # Prefer >=2 grid steps once the batch is non-trivial: DMA/compute overlap plus
    # an even split of the "parallel" batch axis across v7x's two TensorCores.
    if B >= 4 * TILE_ALIGN and -(-B // tile) < 2:
        tile = _round_up(-(-B // 2), TILE_ALIGN)
    return int(max(TILE_ALIGN, (tile // TILE_ALIGN) * TILE_ALIGN))


def _phi_kernel(x_ref, w_ref, b_ref, g1_ref, b1_ref, g2_ref, b2_ref, o_ref,
                *, use_feature_normalization, use_relu):
    x = x_ref[...].astype(jnp.float32)                       # [TB, D]
    D = x.shape[-1]

    if use_feature_normalization:
        # exact two-pass LayerNorm over the feature dim
        mu = jnp.sum(x, axis=-1, keepdims=True) * (1.0 / D)
        xc = x - mu
        var = jnp.sum(xc * xc, axis=-1, keepdims=True) * (1.0 / D)
        x = xc * jax.lax.rsqrt(var + LN_EPS)
        x = x * g1_ref[...].astype(jnp.float32) + b1_ref[...].astype(jnp.float32)

    # Linear(input_dim, 64) on the MXU; operand dtype follows W (f32 or pre-cast bf16),
    # accumulation always f32.
    w = w_ref[...]                                           # [D, 64]
    h = jnp.dot(x.astype(w.dtype), w, preferred_element_type=jnp.float32)
    h = h + b_ref[...].astype(jnp.float32)                   # [TB, 64]

    h = jnp.maximum(h, 0.0) if use_relu else jnp.tanh(h)

    # LayerNorm(64), two-pass
    mu2 = jnp.sum(h, axis=-1, keepdims=True) * (1.0 / HIDDEN)
    hc = h - mu2
    var2 = jnp.sum(hc * hc, axis=-1, keepdims=True) * (1.0 / HIDDEN)
    hn = hc * jax.lax.rsqrt(var2 + LN_EPS)
    out = hn * g2_ref[...].astype(jnp.float32) + b2_ref[...].astype(jnp.float32)

    o_ref[...] = out.astype(o_ref.dtype)


def phi_net_forward(x, params, *, use_feature_normalization=True, use_relu=True,
                    tile_b=None, matmul_dtype=None):
    """x: [B, D]. Returns [B, 64] in x.dtype."""
    B, D = x.shape
    w = params["w"]            # [D, 64]  (Linear weight pre-transposed)
    b = params["b"]            # [1, 64]
    g1 = params["ln0_gamma"]   # [1, D]
    b1 = params["ln0_beta"]    # [1, D]
    g2 = params["ln1_gamma"]   # [1, 64]
    b2 = params["ln1_beta"]    # [1, 64]

    if matmul_dtype is not None:
        w = w.astype(matmul_dtype)    # pre-cast once: halves W DMA + VMEM footprint

    vmem_limit, tile_budget = _vmem_budget()

    if tile_b is None:
        tile_b = _pick_tile_b(B, D, x.dtype.itemsize, w.dtype.itemsize,
                              x.dtype.itemsize, tile_budget)
    else:
        tile_b = max(TILE_ALIGN, _round_up(int(tile_b), TILE_ALIGN))

    num_tiles = -(-B // tile_b)
    if num_tiles > 1 and num_tiles % 2 == 1:
        # keep the tile count even so v7x's two TensorCores get balanced work
        num_tiles += 1
        tile_b = max(TILE_ALIGN, _round_up(-(-B // num_tiles), TILE_ALIGN))
        num_tiles = -(-B // tile_b)

    B_pad = num_tiles * tile_b
    if B_pad != B:
        x = jnp.pad(x, ((0, B_pad - B), (0, 0)))

    kernel = functools.partial(_phi_kernel,
                               use_feature_normalization=use_feature_normalization,
                               use_relu=use_relu)

    x_it = x.dtype.itemsize
    cost = pl.CostEstimate(
        flops=2 * B_pad * D * HIDDEN + 8 * B_pad * (D + HIDDEN),
        transcendentals=(B_pad * (2 if use_feature_normalization else 1)
                         + (0 if use_relu else B_pad * HIDDEN)),
        bytes_accessed=(B_pad * D * x_it + B_pad * HIDDEN * x_it
                        + D * HIDDEN * w.dtype.itemsize + 2 * (D + 3 * HIDDEN) * 4),
    )

    in_specs = [
        pl.BlockSpec((tile_b, D), lambda i: (i, 0)),        # x tile (pipelined)
        pl.BlockSpec((D, HIDDEN), lambda i: (0, 0)),        # W (constant index_map -> no re-DMA)
        pl.BlockSpec((1, HIDDEN), lambda i: (0, 0)),        # bias
        pl.BlockSpec((1, D), lambda i: (0, 0)),             # feature-norm gamma
        pl.BlockSpec((1, D), lambda i: (0, 0)),             # feature-norm beta
        pl.BlockSpec((1, HIDDEN), lambda i: (0, 0)),        # out-LN gamma
        pl.BlockSpec((1, HIDDEN), lambda i: (0, 0)),        # out-LN beta
    ]

    out = pl.pallas_call(
        kernel,
        out_shape=jax.ShapeDtypeStruct((B_pad, HIDDEN), x.dtype),
        grid_spec=pltpu.PrefetchScalarGridSpec(
            num_scalar_prefetch=0,
            grid=(num_tiles,),
            in_specs=in_specs,
            out_specs=pl.BlockSpec((tile_b, HIDDEN), lambda i: (i, 0)),
        ),
        compiler_params=pltpu.CompilerParams(
            dimension_semantics=("parallel",),
            vmem_limit_bytes=vmem_limit),
        cost_estimate=cost,
    )(x, w, b, g1, b1, g2, b2)

    return out[:B]


def init_params(key, input_dim, use_relu=True):
    """Synthetic init mirroring the module's parameter shapes (orthogonal W, zero bias,
    LayerNorm gamma=1 / beta=0, PyTorch defaults)."""
    gain = jnp.sqrt(2.0) if use_relu else 5.0 / 3.0
    w = jax.nn.initializers.orthogonal(scale=gain)(key, (HIDDEN, input_dim), jnp.float32)
    return {
        "w": jnp.transpose(w),                               # [D, 64]
        "b": jnp.zeros((1, HIDDEN), jnp.float32),
        "ln0_gamma": jnp.ones((1, input_dim), jnp.float32),
        "ln0_beta": jnp.zeros((1, input_dim), jnp.float32),
        "ln1_gamma": jnp.ones((1, HIDDEN), jnp.float32),
        "ln1_beta": jnp.zeros((1, HIDDEN), jnp.float32),
    }


def _reference(x, params, use_feature_normalization=True, use_relu=True, matmul_dtype=None):
    h = x
    if use_feature_normalization:
        mu = jnp.mean(h, -1, keepdims=True)
        var = jnp.mean((h - mu) ** 2, -1, keepdims=True)
        h = (h - mu) / jnp.sqrt(var + LN_EPS)
        h = h * params["ln0_gamma"] + params["ln0_beta"]
    w = params["w"]
    if matmul_dtype is not None:
        h = h.astype(matmul_dtype)
        w = w.astype(matmul_dtype)
    h = jnp.dot(h, w, preferred_element_type=jnp.float32) + params["b"]
    h = jnp.maximum(h, 0.0) if use_relu else jnp.tanh(h)
    mu = jnp.mean(h, -1, keepdims=True)
    var = jnp.mean((h - mu) ** 2, -1, keepdims=True)
    h = (h - mu) / jnp.sqrt(var + LN_EPS)
    return h * params["ln1_gamma"] + params["ln1_beta"]


if __name__ == "__main__":
    key = jax.random.PRNGKey(0)
    k_x, k_w = jax.random.split(key)

    batch, input_dim = 8, 32
    x = jax.random.normal(k_x, (batch, input_dim), jnp.float32)

    # ReLU + feature normalization (main config)
    params = init_params(k_w, input_dim, use_relu=True)
    out = jax.block_until_ready(
        phi_net_forward(x, params, use_feature_normalization=True, use_relu=True))
    ref = _reference(x, params, True, True)
    assert out.shape == (batch, HIDDEN)
    assert jnp.allclose(out, ref, atol=2e-4, rtol=2e-4), "mismatch (relu + feature norm)"

    # Tanh, no feature normalization (other branch)
    params_t = init_params(k_w, input_dim, use_relu=False)
    out_t = jax.block_until_ready(
        phi_net_forward(x, params_t, use_feature_normalization=False, use_relu=False))
    ref_t = _reference(x, params_t, False, False)
    assert jnp.allclose(out_t, ref_t, atol=2e-4, rtol=2e-4), "mismatch (tanh, no feature norm)"

    # Batch not divisible by the tile -> exercises the padding / tail-slice path
    x_odd = jax.random.normal(k_x, (11, input_dim), jnp.float32)
    out_odd = jax.block_until_ready(phi_net_forward(x_odd, params))
    ref_odd = _reference(x_odd, params, True, True)
    assert out_odd.shape == (11, HIDDEN)
    assert jnp.allclose(out_odd, ref_odd, atol=2e-4, rtol=2e-4), "mismatch (padded batch)"

    # bf16 MXU path (weights pre-cast in the wrapper, f32 accumulation)
    out_bf = jax.block_until_ready(
        phi_net_forward(x, params, use_feature_normalization=True, use_relu=True,
                        matmul_dtype=jnp.bfloat16))
    ref_bf = _reference(x, params, True, True, matmul_dtype=jnp.bfloat16)
    assert jnp.allclose(out_bf, ref_bf, atol=2e-3, rtol=2e-3), "mismatch (bf16 matmul path)"

    print("KERNEL_OK")
</pallas_src>

<mosaic_0001>
module attributes {stable_mosaic.version = 11 : i64} {
  func.func @_phi_kernel(%arg0: i32, %arg1: memref<16x32xf32, #tpu.memory_space<vmem>>, %arg2: memref<32x64xf32, #tpu.memory_space<vmem>>, %arg3: memref<1x64xf32, #tpu.memory_space<vmem>>, %arg4: memref<1x32xf32, #tpu.memory_space<vmem>>, %arg5: memref<1x32xf32, #tpu.memory_space<vmem>>, %arg6: memref<1x64xf32, #tpu.memory_space<vmem>>, %arg7: memref<1x64xf32, #tpu.memory_space<vmem>>, %arg8: memref<16x64xf32, #tpu.memory_space<vmem>>) attributes {dimension_semantics = [#tpu.dimension_semantics<parallel>], iteration_bounds = array<i64: 1>, scalar_prefetch = 0 : i64, scratch_operands = 0 : i64, tpu.core_type = #tpu.core_type<tc>, window_params = [{transform_indices = @transform_0, window_bounds = array<i64: 16, 32>}, {pipeline_mode = #tpu.pipeline_mode<synchronous>, transform_indices = @transform_1, window_bounds = array<i64: 32, 64>}, {pipeline_mode = #tpu.pipeline_mode<synchronous>, transform_indices = @transform_2, window_bounds = array<i64: 1, 64>}, {pipeline_mode = #tpu.pipeline_mode<synchronous>, transform_indices = @transform_3, window_bounds = array<i64: 1, 32>}, {pipeline_mode = #tpu.pipeline_mode<synchronous>, transform_indices = @transform_4, window_bounds = array<i64: 1, 32>}, {pipeline_mode = #tpu.pipeline_mode<synchronous>, transform_indices = @transform_5, window_bounds = array<i64: 1, 64>}, {pipeline_mode = #tpu.pipeline_mode<synchronous>, transform_indices = @transform_6, window_bounds = array<i64: 1, 64>}, {transform_indices = @transform_7, window_bounds = array<i64: 16, 64>}]} {
    %c0 = arith.constant 0 : index
    %c0_0 = arith.constant 0 : index
    %0 = vector.load %arg1[%c0, %c0_0] : memref<16x32xf32, #tpu.memory_space<vmem>>, vector<16x32xf32>
    %cst = arith.constant dense<0.000000e+00> : vector<16xf32>
    %1 = vector.multi_reduction <add>, %0, %cst [1] : vector<16x32xf32> to vector<16xf32>
    %2 = vector.shape_cast %1 : vector<16xf32> to vector<16x1xf32>
    %cst_1 = arith.constant 3.125000e-02 : f32
    %3 = vector.broadcast %cst_1 : f32 to vector<16x1xf32>
    %4 = arith.mulf %2, %3 : vector<16x1xf32>
    %5 = vector.broadcast %4 : vector<16x1xf32> to vector<16x32xf32>
    %6 = arith.subf %0, %5 : vector<16x32xf32>
    %7 = arith.mulf %6, %6 : vector<16x32xf32>
    %cst_2 = arith.constant dense<0.000000e+00> : vector<16xf32>
    %8 = vector.multi_reduction <add>, %7, %cst_2 [1] : vector<16x32xf32> to vector<16xf32>
    %9 = vector.shape_cast %8 : vector<16xf32> to vector<16x1xf32>
    %cst_3 = arith.constant 3.125000e-02 : f32
    %10 = vector.broadcast %cst_3 : f32 to vector<16x1xf32>
    %11 = arith.mulf %9, %10 : vector<16x1xf32>
    %cst_4 = arith.constant 9.99999974E-6 : f32
    %12 = vector.broadcast %cst_4 : f32 to vector<16x1xf32>
    %13 = arith.addf %11, %12 : vector<16x1xf32>
    %14 = math.rsqrt %13 : vector<16x1xf32>
    %15 = vector.broadcast %14 : vector<16x1xf32> to vector<16x32xf32>
    %16 = arith.mulf %6, %15 : vector<16x32xf32>
    %c0_5 = arith.constant 0 : index
    %c0_6 = arith.constant 0 : index
    %17 = vector.load %arg4[%c0_5, %c0_6] : memref<1x32xf32, #tpu.memory_space<vmem>>, vector<1x32xf32>
    %18 = vector.broadcast %17 : vector<1x32xf32> to vector<16x32xf32>
    %19 = arith.mulf %16, %18 : vector<16x32xf32>
    %c0_7 = arith.constant 0 : index
    %c0_8 = arith.constant 0 : index
    %20 = vector.load %arg5[%c0_7, %c0_8] : memref<1x32xf32, #tpu.memory_space<vmem>>, vector<1x32xf32>
    %21 = vector.broadcast %20 : vector<1x32xf32> to vector<16x32xf32>
    %22 = arith.addf %19, %21 : vector<16x32xf32>
    %c0_9 = arith.constant 0 : index
    %c0_10 = arith.constant 0 : index
    %23 = vector.load %arg2[%c0_9, %c0_10] : memref<32x64xf32, #tpu.memory_space<vmem>>, vector<32x64xf32>
    %cst_11 = arith.constant dense<0.000000e+00> : vector<16x64xf32>
    %24 = tpu.matmul %22, %23, %cst_11 {dimension_numbers = #tpu.dot_dimension_numbers<[1], [0], [0], [1], [0, 0, 1, 1], [], []>} : vector<16x32xf32>, vector<32x64xf32>, vector<16x64xf32> -> vector<16x64xf32>
    %c0_12 = arith.constant 0 : index
    %c0_13 = arith.constant 0 : index
    %25 = vector.load %arg3[%c0_12, %c0_13] : memref<1x64xf32, #tpu.memory_space<vmem>>, vector<1x64xf32>
    %26 = vector.broadcast %25 : vector<1x64xf32> to vector<16x64xf32>
    %27 = arith.addf %24, %26 : vector<16x64xf32>
    %cst_14 = arith.constant 0.000000e+00 : f32
    %28 = vector.broadcast %cst_14 : f32 to vector<16x64xf32>
    %29 = arith.maximumf %27, %28 : vector<16x64xf32>
    %cst_15 = arith.constant dense<0.000000e+00> : vector<16xf32>
    %30 = vector.multi_reduction <add>, %29, %cst_15 [1] : vector<16x64xf32> to vector<16xf32>
    %31 = vector.shape_cast %30 : vector<16xf32> to vector<16x1xf32>
    %cst_16 = arith.constant 1.562500e-02 : f32
    %32 = vector.broadcast %cst_16 : f32 to vector<16x1xf32>
    %33 = arith.mulf %31, %32 : vector<16x1xf32>
    %34 = vector.broadcast %33 : vector<16x1xf32> to vector<16x64xf32>
    %35 = arith.subf %29, %34 : vector<16x64xf32>
    %36 = arith.mulf %35, %35 : vector<16x64xf32>
    %cst_17 = arith.constant dense<0.000000e+00> : vector<16xf32>
    %37 = vector.multi_reduction <add>, %36, %cst_17 [1] : vector<16x64xf32> to vector<16xf32>
    %38 = vector.shape_cast %37 : vector<16xf32> to vector<16x1xf32>
    %cst_18 = arith.constant 1.562500e-02 : f32
    %39 = vector.broadcast %cst_18 : f32 to vector<16x1xf32>
    %40 = arith.mulf %38, %39 : vector<16x1xf32>
    %cst_19 = arith.constant 9.99999974E-6 : f32
    %41 = vector.broadcast %cst_19 : f32 to vector<16x1xf32>
    %42 = arith.addf %40, %41 : vector<16x1xf32>
    %43 = math.rsqrt %42 : vector<16x1xf32>
    %44 = vector.broadcast %43 : vector<16x1xf32> to vector<16x64xf32>
    %45 = arith.mulf %35, %44 : vector<16x64xf32>
    %c0_20 = arith.constant 0 : index
    %c0_21 = arith.constant 0 : index
    %46 = vector.load %arg6[%c0_20, %c0_21] : memref<1x64xf32, #tpu.memory_space<vmem>>, vector<1x64xf32>
    %47 = vector.broadcast %46 : vector<1x64xf32> to vector<16x64xf32>
    %48 = arith.mulf %45, %47 : vector<16x64xf32>
    %c0_22 = arith.constant 0 : index
    %c0_23 = arith.constant 0 : index
    %49 = vector.load %arg7[%c0_22, %c0_23] : memref<1x64xf32, #tpu.memory_space<vmem>>, vector<1x64xf32>
    %50 = vector.broadcast %49 : vector<1x64xf32> to vector<16x64xf32>
    %51 = arith.addf %48, %50 : vector<16x64xf32>
    %c0_24 = arith.constant 0 : index
    %c0_25 = arith.constant 0 : index
    %52 = vector.load %arg8[%c0_24, %c0_25] : memref<16x64xf32, #tpu.memory_space<vmem>>, vector<16x64xf32>
    tpu.vector_store %arg8[%c0_24, %c0_25], %51 {strides = array<i32>} : memref<16x64xf32, #tpu.memory_space<vmem>>, vector<16x64xf32>,
    return
  }
  func.func @transform_0(%arg0: i32) -> (i32, i32) {
    %c0_i32 = arith.constant 0 : i32
    %c0_i32_0 = arith.constant 0 : i32
    return %arg0, %c0_i32 : i32, i32
  }
  func.func @transform_1(%arg0: i32) -> (i32, i32) {
    %c0_i32 = arith.constant 0 : i32
    %c0_i32_0 = arith.constant 0 : i32
    %c0_i32_1 = arith.constant 0 : i32
    return %c0_i32, %c0_i32_0 : i32, i32
  }
  func.func @transform_2(%arg0: i32) -> (i32, i32) {
    %c0_i32 = arith.constant 0 : i32
    %c0_i32_0 = arith.constant 0 : i32
    %c0_i32_1 = arith.constant 0 : i32
    return %c0_i32, %c0_i32_0 : i32, i32
  }
  func.func @transform_3(%arg0: i32) -> (i32, i32) {
    %c0_i32 = arith.constant 0 : i32
    %c0_i32_0 = arith.constant 0 : i32
    %c0_i32_1 = arith.constant 0 : i32
    return %c0_i32, %c0_i32_0 : i32, i32
  }
  func.func @transform_4(%arg0: i32) -> (i32, i32) {
    %c0_i32 = arith.constant 0 : i32
    %c0_i32_0 = arith.constant 0 : i32
    %c0_i32_1 = arith.constant 0 : i32
    return %c0_i32, %c0_i32_0 : i32, i32
  }
  func.func @transform_5(%arg0: i32) -> (i32, i32) {
    %c0_i32 = arith.constant 0 : i32
    %c0_i32_0 = arith.constant 0 : i32
    %c0_i32_1 = arith.constant 0 : i32
    return %c0_i32, %c0_i32_0 : i32, i32
  }
  func.func @transform_6(%arg0: i32) -> (i32, i32) {
    %c0_i32 = arith.constant 0 : i32
    %c0_i32_0 = arith.constant 0 : i32
    %c0_i32_1 = arith.constant 0 : i32
    return %c0_i32, %c0_i32_0 : i32, i32
  }
  func.func @transform_7(%arg0: i32) -> (i32, i32) {
    %c0_i32 = arith.constant 0 : i32
    %c0_i32_0 = arith.constant 0 : i32
    return %arg0, %c0_i32 : i32, i32
  }
}

</mosaic_0001>

<llo_original>
// kernel: tpu_custom_call.1
$region0: #{tpu_custom_call.1}
  #allocation0 [shape = 'u32[]', space=smem, size = 0x4, offset = 0x4, fixed_abs, tag = 'smem constant byte address 0x4 - core index']
  #allocation1 [shape = 'u32[144,128]{1,0:T(1,128)}', space=vmem, size = 0x12000, scoped, tag = 'internal scratch']
  %s0 = inlined_call_operand.hbm [shape: f32[16,32], index: 0, kind: input, shape index: {}]
  %s1 = inlined_call_operand.hbm [shape: f32[32,64], index: 1, kind: input, shape index: {}]
  %s2 = inlined_call_operand.vmem [shape: f32[1,64], index: 2, kind: input, shape index: {}]
  %s3 = inlined_call_operand.vmem [shape: f32[1,32], index: 3, kind: input, shape index: {}]
  %s4 = inlined_call_operand.vmem [shape: f32[1,32], index: 4, kind: input, shape index: {}]
  %s5 = inlined_call_operand.vmem [shape: f32[1,64], index: 5, kind: input, shape index: {}]
  %s6 = inlined_call_operand.vmem [shape: f32[1,64], index: 6, kind: input, shape index: {}]
  %s7 = inlined_call_operand.hbm [shape: f32[16,64], index: 7, kind: output, shape index: {}]
  %s8 = sld [smem:[#allocation0]]
  $region46: #{tpu_custom_call.1} parent=0
    _
  %s10 = ssub.s32 1, %s8
  %s11 = scalar_select 0, %s10, %s8
  $region1: #{tpu_custom_call.1} parent=0
    #allocation2 [shape = 'u8[8192]{0}', space=vmem, size = 0x2000, scoped, tag = 'input window, operand 0, single buffered']
    #allocation3 [shape = 's32[1]{0}', space=sflag, size = 0x4, scoped, tag = 'scoped memory for tpu_custom_call.1']
    #allocation4 [shape = 's32[1]{0}', space=sflag, size = 0x4, scoped, tag = 'scoped memory for tpu_custom_call.1']
    #allocation5 [shape = 'u8[16384]{0}', space=vmem, size = 0x4000, scoped, tag = 'input window, operand 1, single buffered']
    #allocation6 [shape = 's32[1]{0}', space=sflag, size = 0x4, scoped, tag = 'scoped memory for tpu_custom_call.1']
    #allocation7 [shape = 'u8[8192]{0}', space=vmem, size = 0x2000, scoped, tag = 'output window, operand 0, single buffered']
    %12 = vsyncpa [#allocation3], 0
    %13 = vsyncpa [#allocation6], 0
    %14 = vsyncpa [#allocation4], 0
    // Predicated region
    $region2: #{tpu_custom_call.1} parent=1 // pred_check
      _
    $region3: #{tpu_custom_call.1} parent=1 // pred_check_branch
      %16 = sbr.rel (0) target = $region5
    $region4: #{tpu_custom_call.1} parent=1 // pred_region
      %s18 = ssub.s32 256, 256
      %19 = vsyncadd [#allocation3], %s18
      %s20 = sshll.u32 [#allocation2], 4
      %s21 = int_to_ptr.vmem [resolvable:$true] %s20
      %26 = dma.hbm_to_vmem [thread:$0]  %s0, 256, %s21, [#allocation3], 128, 128, 8
    $region5: #{tpu_custom_call.1} parent=1 // pred_fallthru
      _
    // Predicated region
    $region6: #{tpu_custom_call.1} parent=1 // pred_check
      _
    $region7: #{tpu_custom_call.1} parent=1 // pred_check_branch
      %28 = sbr.rel (0) target = $region9
    $region8: #{tpu_custom_call.1} parent=1 // pred_region
      %s30 = ssub.s32 512, 512
      %31 = vsyncadd [#allocation6], %s30
      %s32 = sshll.u32 [#allocation5], 4
      %s33 = int_to_ptr.vmem [resolvable:$true] %s32
      %38 = dma.hbm_to_vmem [thread:$0]  %s1, 512, %s33, [#allocation6], 128, 128, 8
    $region9: #{tpu_custom_call.1} parent=1 // pred_fallthru
      _
    // Predicated region
    $region10: #{tpu_custom_call.1} parent=1 // pred_check
      _
    $region11: #{tpu_custom_call.1} parent=1 // pred_check_branch
      %40 = sbr.rel (0) target = $region13
    $region12: #{tpu_custom_call.1} parent=1 // pred_region
      _
    $region13: #{tpu_custom_call.1} parent=1 // pred_fallthru
      _
    // Predicated region
    $region14: #{tpu_custom_call.1} parent=1 // pred_check
      _
    $region15: #{tpu_custom_call.1} parent=1 // pred_check_branch
      %42 = sbr.rel (0) target = $region17
    $region16: #{tpu_custom_call.1} parent=1 // pred_region
      _
    $region17: #{tpu_custom_call.1} parent=1 // pred_fallthru
      _
    // Predicated region
    $region18: #{tpu_custom_call.1} parent=1 // pred_check
      _
    $region19: #{tpu_custom_call.1} parent=1 // pred_check_branch
      %44 = sbr.rel (0) target = $region21
    $region20: #{tpu_custom_call.1} parent=1 // pred_region
      _
    $region21: #{tpu_custom_call.1} parent=1 // pred_fallthru
      _
    // Predicated region
    $region22: #{tpu_custom_call.1} parent=1 // pred_check
      _
    $region23: #{tpu_custom_call.1} parent=1 // pred_check_branch
      %46 = sbr.rel (0) target = $region25
    $region24: #{tpu_custom_call.1} parent=1 // pred_region
      _
    $region25: #{tpu_custom_call.1} parent=1 // pred_fallthru
      _
    // Predicated region
    $region26: #{tpu_custom_call.1} parent=1 // pred_check
      _
    $region27: #{tpu_custom_call.1} parent=1 // pred_check_branch
      %48 = sbr.rel (0) target = $region29
    $region28: #{tpu_custom_call.1} parent=1 // pred_region
      _
    $region29: #{tpu_custom_call.1} parent=1 // pred_fallthru
      _
    // Predicated region
    $region30: #{tpu_custom_call.1} parent=1 // pred_check
      _
    $region31: #{tpu_custom_call.1} parent=1 // pred_check_branch
      %50 = sbr.rel (0) target = $region33
    $region32: #{tpu_custom_call.1} parent=1 // pred_region
      %51 = dma.done [#allocation3], 256
    $region33: #{tpu_custom_call.1} parent=1 // pred_fallthru
      _
    // Predicated region
    $region34: #{tpu_custom_call.1} parent=1 // pred_check
      _
    $region35: #{tpu_custom_call.1} parent=1 // pred_check_branch
      %53 = sbr.rel (0) target = $region37
    $region36: #{tpu_custom_call.1} parent=1 // pred_region
      %54 = dma.done [#allocation6], 512
    $region37: #{tpu_custom_call.1} parent=1 // pred_fallthru
      _
    %v55 = vld [vmem:[#allocation2] sm:$0xff]
    %v56 = vld [vmem:[#allocation2 + $0x8] sm:$0xff]
    %vm57 = vcmask 261120
    %v58 = vsel %vm57, %v55, 0.0
    %59 = vadd.xlane.f32.xlu0 %v58
    %v60 = vpop.xlane.xlu0 %59
    %v61 = vsel %vm57, %v56, 0.0
    %62 = vadd.xlane.f32.xlu0 %v61
    %v63 = vpop.xlane.xlu0 %62
    %v64 = vmul.f32 %v60, 0.03125
    %v65 = vmul.f32 %v63, 0.03125
    %v66 = vsub.f32 %v55, %v64
    %v67 = vsub.f32 %v56, %v65
    %v68 = vmul.f32 %v66, %v66
    %v69 = vmul.f32 %v67, %v67
    %v70 = vsel %vm57, %v68, 0.0
    %71 = vadd.xlane.f32.xlu0 %v70
    %v72 = vpop.xlane.xlu0 %71
    %v73 = vsel %vm57, %v69, 0.0
    %74 = vadd.xlane.f32.xlu0 %v73
    %v75 = vpop.xlane.xlu0 %74
    %v76 = vmul.f32 %v72, 0.03125
    %v77 = vmul.f32 %v75, 0.03125
    %v78 = vadd.f32 %v76, 1e-05
    %v79 = vadd.f32 %v77, 1e-05
    %v80 = vrsqrt.pop %v78
    %v81 = vrsqrt.pop %v79
    %v82 = vmul.f32 %v66, %v80
    %v83 = vmul.f32 %v67, %v81
    %v84 = vld [vmem:[%s3] sm:$0x1]
    %v86 = vlaneseq
    %v87 = vshrl.u32 %v86, 7
    %v88 = vsub.s32 0, %v87
    %v89 = vrot.slane %v84, %v88
    %v91 = vmul.f32 %v82, %v89
    %v92 = vmul.f32 %v83, %v89
    %v93 = vld [vmem:[%s4] sm:$0x1]
    %v95 = vlaneseq
    %v96 = vshrl.u32 %v95, 7
    %v97 = vsub.s32 0, %v96
    %v98 = vrot.slane %v93, %v97
    %v100 = vadd.f32 %v91, %v98
    %v101 = vadd.f32 %v92, %v98
    %v102 = vld [vmem:[#allocation5] sm:$0xff]
    %v103 = vld [vmem:[#allocation5 + $0x8] sm:$0xff]
    %v104 = vld [vmem:[#allocation5 + $0x10] sm:$0xff]
    %v105 = vld [vmem:[#allocation5 + $0x18] sm:$0xff]
    %v106 = vld [vmem:[%s2] sm:$0x1]
    %v108 = vlaneseq
    %v109 = vshrl.u32 %v108, 7
    %v110 = vsub.s32 0, %v109
    %v111 = vrot.slane %v106, %v110
    %v114 = vsel %vm57, %v100, 0
    %v117 = vsel %vm57, %v101, 0
    %119 = vmatprep.subr.mxu0 0.0
    %120 = vmatpush1.msra.mxu0 %v102
    %121 = vmatprep.subr.mxu0 0.0
    %122 = vmatpush1.msra.mxu0 %v103
    %123 = vmatprep.subr.mxu0 0.0
    %124 = vmatpush1.msra.mxu0 %v104
    %125 = vmatprep.subr.mxu0 0.0
    %126 = vmatpush1.msra.mxu0 %v105
    %127 = vmatprep.subr.mxu0 0.0
    %128 = vmatpush1.msra.mxu0 0.0
    %129 = vmatprep.subr.mxu0 0.0
    %130 = vmatpush1.msra.mxu0 0.0
    %131 = vmatprep.subr.mxu0 0.0
    %132 = vmatpush1.msra.mxu0 0.0
    %133 = vmatprep.subr.mxu0 0.0
    %134 = vmatpush1.msra.mxu0 0.0
    %135 = vmatprep.subr.mxu0 0.0
    %136 = vmatpush1.msra.mxu0 0.0
    %137 = vmatprep.subr.mxu0 0.0
    %138 = vmatpush1.msra.mxu0 0.0
    %139 = vmatprep.subr.mxu0 0.0
    %140 = vmatpush1.msra.mxu0 0.0
    %141 = vmatprep.subr.mxu0 0.0
    %142 = vmatpush1.msra.mxu0 0.0
    %143 = vmatprep.subr.mxu0 0.0
    %144 = vmatpush1.msra.mxu0 0.0
    %145 = vmatprep.subr.mxu0 0.0
    %146 = vmatpush1.msra.mxu0 0.0
    %147 = vmatprep.subr.mxu0 0.0
    %148 = vmatpush1.msra.mxu0 0.0
    %149 = vmatprep.subr.mxu0 0.0
    %150 = vmatpush1.msra.mxu0 0.0
    %151 = vmatprep.subr.mxu0 0.0
    %152 = vmatpush1.msra.mxu0 0.0
    %153 = vmatprep.subr.mxu0 0.0
    %154 = vmatpush1.msra.mxu0 0.0
    %155 = vmatprep.subr.mxu0 0.0
    %156 = vmatpush1.msra.mxu0 0.0
    %157 = vmatprep.subr.mxu0 0.0
    %158 = vmatpush1.msra.mxu0 0.0
    %159 = vmatprep.subr.mxu0 0.0
    %160 = vmatpush1.msra.mxu0 0.0
    %161 = vmatprep.subr.mxu0 0.0
    %162 = vmatpush1.msra.mxu0 0.0
    %163 = vmatprep.subr.mxu0 0.0
    %164 = vmatpush1.msra.mxu0 0.0
    %165 = vmatprep.subr.mxu0 0.0
    %166 = vmatpush1.msra.mxu0 0.0
    %167 = vmatprep.subr.mxu0 0.0
    %168 = vmatpush1.msra.mxu0 0.0
    %169 = vmatprep.subr.mxu0 0.0
    %170 = vmatpush1.msra.mxu0 0.0
    %171 = vmatprep.subr.mxu0 0.0
    %172 = vmatpush1.msra.mxu0 0.0
    %173 = vmatprep.subr.mxu0 0.0
    %174 = vmatpush1.msra.mxu0 0.0
    %175 = vmatprep.subr.mxu0 0.0
    %176 = vmatpush1.msra.mxu0 0.0
    %177 = vmatprep.subr.mxu0 0.0
    %178 = vmatpush1.msra.mxu0 0.0
    %179 = vmatprep.subr.mxu0 0.0
    %180 = vmatpush1.msra.mxu0 0.0
    %181 = vmatprep.subr.mxu0 0.0
    %182 = vmatpush1.msra.mxu0 0.0
    %183 = vmatprep.mubr.f32.mxu0 0.0
    %184 = vmatmul.mubr.f32.gmra.mrb[0].mxu0 %v114
    %v185 = vpop.f32.mrb[0].mxu0
    %v186 = vadd.f32 %v111, %v185
    %v187 = vpop.f32.mrb[0].mxu0
    %188 = vmatprep.mubr.f32.mxu0 0.0
    %189 = vmatmul.mubr.f32.gmra.mrb[0].mxu0 %v117
    %v190 = vpop.f32.mrb[0].mxu0
    %v191 = vadd.f32 %v111, %v190
    %v192 = vpop.f32.mrb[0].mxu0
    %193 = vdwg.mxu0
    %v194 = vmax.f32 %v186, 0.0
    %v195 = vmax.f32 %v191, 0.0
    %vm196 = vcmask 523264
    %v197 = vsel %vm196, %v194, 0.0
    %198 = vadd.xlane.f32.xlu0 %v197
    %v199 = vpop.xlane.xlu0 %198
    %v200 = vsel %vm196, %v195, 0.0
    %201 = vadd.xlane.f32.xlu0 %v200
    %v202 = vpop.xlane.xlu0 %201
    %v203 = vmul.f32 %v199, 0.015625
    %v204 = vmul.f32 %v202, 0.015625
    %v205 = vsub.f32 %v194, %v203
    %v206 = vsub.f32 %v195, %v204
    %v207 = vmul.f32 %v205, %v205
    %v208 = vmul.f32 %v206, %v206
    %v209 = vsel %vm196, %v207, 0.0
    %210 = vadd.xlane.f32.xlu0 %v209
    %v211 = vpop.xlane.xlu0 %210
    %v212 = vsel %vm196, %v208, 0.0
    %213 = vadd.xlane.f32.xlu0 %v212
    %v214 = vpop.xlane.xlu0 %213
    %v215 = vmul.f32 %v211, 0.015625
    %v216 = vmul.f32 %v214, 0.015625
    %v217 = vadd.f32 %v215, 1e-05
    %v218 = vadd.f32 %v216, 1e-05
    %v219 = vrsqrt.pop %v217
    %v220 = vrsqrt.pop %v218
    %v221 = vmul.f32 %v205, %v219
    %v222 = vmul.f32 %v206, %v220
    %v223 = vld [vmem:[%s5] sm:$0x1]
    %v225 = vlaneseq
    %v226 = vshrl.u32 %v225, 7
    %v227 = vsub.s32 0, %v226
    %v228 = vrot.slane %v223, %v227
    %v230 = vmul.f32 %v221, %v228
    %v231 = vmul.f32 %v222, %v228
    %v232 = vld [vmem:[%s6] sm:$0x1]
    %v234 = vlaneseq
    %v235 = vshrl.u32 %v234, 7
    %v236 = vsub.s32 0, %v235
    %v237 = vrot.slane %v232, %v236
    %v239 = vadd.f32 %v230, %v237
    %v240 = vadd.f32 %v231, %v237
    %241 = vst.msk [vmem:[#allocation7] sm:$0xff] %vm196, %v239
    %242 = vst.msk [vmem:[#allocation7 + $0x8] sm:$0xff] %vm196, %v240
    // Predicated region
    $region38: #{tpu_custom_call.1} parent=1 // pred_check
      _
    $region39: #{tpu_custom_call.1} parent=1 // pred_check_branch
      %244 = sbr.rel (0) target = $region41
    $region40: #{tpu_custom_call.1} parent=1 // pred_region
      %s246 = ssub.s32 256, 256
      %247 = vsyncadd [#allocation4], %s246
      %s248 = sshll.u32 [#allocation7], 4
      %s249 = int_to_ptr.vmem [resolvable:$true] %s248
      %254 = dma.vmem_to_hbm [thread:$0]  %s249, 256, %s7, [#allocation4], 128, 128, 8
    $region41: #{tpu_custom_call.1} parent=1 // pred_fallthru
      _
    // Predicated region
    $region42: #{tpu_custom_call.1} parent=1 // pred_check
      _
    $region43: #{tpu_custom_call.1} parent=1 // pred_check_branch
      %256 = sbr.rel (0) target = $region45
    $region44: #{tpu_custom_call.1} parent=1 // pred_region
      %257 = dma.done [#allocation4], 256
    $region45: #{tpu_custom_call.1} parent=1 // pred_fallthru
      _
    %258 = vsyncpa [#allocation3], 1
    %259 = vsyncpa [#allocation6], 1
    %260 = vsyncpa [#allocation4], 1

</llo_original>
